<compile_context>
chip_gen: v5e
topology: v5e:2x2
jax: 0.10.0
libtpu: 0.0.40
codegen_flags: <defaults>
</compile_context>

<pallas_src>
import math

import jax
import jax.numpy as jnp
from jax import lax
from jax.experimental import pallas as pl
from jax.experimental.pallas import tpu as pltpu


_MASK_DTYPE_CACHE = None


def _mask_out_dtype():
    """bool if Mosaic can store bool kernel outputs directly (saves a full
    extra HBM read+write astype pass in the wrapper), else int8."""
    global _MASK_DTYPE_CACHE
    if _MASK_DTYPE_CACHE is None:
        def probe(x_ref, o_ref):
            o_ref[...] = x_ref[...] > 0.0
        try:
            out = pl.pallas_call(
                probe,
                out_shape=jax.ShapeDtypeStruct((8, 128), jnp.bool_),
            )(jnp.zeros((8, 128), jnp.float32))
            jax.block_until_ready(out)
            _MASK_DTYPE_CACHE = jnp.bool_
        except Exception:
            _MASK_DTYPE_CACHE = jnp.int8
    return _MASK_DTYPE_CACHE


def _fold_plan(batch: int, dims: int):
    """Return (r, pad_rows): fold factor r (rows folded into the lane axis)
    and the number of NaN rows to append so that batch % r == 0.  With the
    fold, D_f = r*dims is a multiple of 128 (unmasked, lane-dense stores)."""
    if dims % 128 == 0:
        return 1, 0
    r = 128 // math.gcd(dims, 128)
    if batch % r == 0:
        return r, 0
    if dims < 128:
        # Lane-sparse output is the biggest layout cliff for small D; a tiny
        # NaN-row pad (masked out automatically) beats masked partial stores.
        return r, r - batch % r
    return 1, 0


def multi_dim_nan_tolerant_l1_loss(y_pred: jax.Array, y_true: jax.Array):
    """Pallas TPU implementation of MultiDimNaNTolerantL1Loss.forward.

    Args:
        y_pred: [batch_size, num_dims] float array (no NaNs expected).
        y_true: [batch_size, num_dims] float array (may contain NaN).

    Returns:
        (dim_means [num_dims] float32, mask [batch_size, num_dims] bool)
    """
    assert y_pred.shape == y_true.shape, (
        "Predictions and targets must have the same shape"
    )
    B, D = y_pred.shape
    in_itemsize = jnp.dtype(y_pred.dtype).itemsize
    mask_dtype = _mask_out_dtype()

    # ---- layout: lane-dense fold (pad with NaN rows if needed) ----
    r, pad = _fold_plan(B, D)
    if pad:
        y_pred = jnp.concatenate(
            [y_pred, jnp.zeros((pad, D), y_pred.dtype)], axis=0)
        y_true = jnp.concatenate(
            [y_true, jnp.full((pad, D), jnp.nan, y_true.dtype)], axis=0)
    B_pad = B + pad
    B_f, D_f = B_pad // r, r * D
    pred_f = y_pred.reshape(B_f, D_f)   # contiguous reshape: no data movement
    true_f = y_true.reshape(B_f, D_f)

    # ---- tile size: ~20 MiB of double-buffered tiles, explicit VMEM limit ----
    TILE_BUDGET = 20 * 1024 * 1024
    bytes_per_row = D_f * (4 * in_itemsize + 2)    # 2 inputs + mask, 2x-buffered
    tb = max(8, min(8192, TILE_BUDGET // max(1, bytes_per_row)))
    if tb >= B_f:
        tb = B_f                                    # single tile (full dim OK)
    else:
        align = 32 if tb >= 32 else 8               # int8/bool tiles: 32-row align
        tb = (tb // align) * align
        # Prefer tb that divides B_f: the ragged-tail guard is then skipped
        # entirely at trace time (no per-tile iota/compare/and in steady state).
        for cand in range(tb, max(align - 1, tb // 2), -align):
            if B_f % cand == 0:
                tb = cand
                break
    num_tiles = pl.cdiv(B_f, tb)
    ragged = (B_f % tb) != 0

    # v7x: split the tile stream across the 2 TensorCores (leading "parallel"
    # axis, per-core accumulator rows).  Sequential/no-op on 1-TC chips.
    cores = 2 if (num_tiles % 2 == 0) else 1
    tpc = num_tiles // cores

    acc_rows = 8 if tb % 8 == 0 else 1

    def kernel(pred_ref, true_ref, sum_ref, cnt_ref, mask_ref):
        i = pl.program_id(1)

        @pl.when(i == 0)
        def _():
            sum_ref[...] = jnp.zeros_like(sum_ref)
            cnt_ref[...] = jnp.zeros_like(cnt_ref)

        true = true_ref[...]
        valid = jnp.logical_not(jnp.isnan(true))

        if ragged:
            # Only emitted when the last tile hangs past B_f: garbage rows in
            # the padded block must not contribute to sums/counts.
            t = pl.program_id(0) * tpc + i
            rows = t * tb + lax.broadcasted_iota(jnp.int32, (tb, D_f), 0)
            valid = jnp.logical_and(valid, rows < B_f)

        diff = pred_ref[...].astype(jnp.float32) - true.astype(jnp.float32)
        abs_err = jnp.where(valid, jnp.abs(diff), 0.0)

        # Reduce each tile only down to `acc_rows` sublanes: pure vreg-wise
        # VALU adds (no cross-sublane XLU reduce); final fold in the wrapper.
        sum_ref[...] += abs_err.reshape(-1, acc_rows, D_f).sum(axis=0)
        cnt_ref[...] += (
            valid.astype(jnp.int32).reshape(-1, acc_rows, D_f).sum(axis=0)
        )

        mask_ref[...] = valid.astype(mask_dtype)

    cost = pl.CostEstimate(
        flops=int(6 * B_pad * D),
        transcendentals=0,
        bytes_accessed=int(B_pad * D * (2 * in_itemsize + 1)
                           + 2 * cores * acc_rows * D_f * 4),
    )

    sums_o, cnts_o, mask_o = pl.pallas_call(
        kernel,
        out_shape=(
            jax.ShapeDtypeStruct((cores * acc_rows, D_f), jnp.float32),
            jax.ShapeDtypeStruct((cores * acc_rows, D_f), jnp.int32),
            jax.ShapeDtypeStruct((B_f, D_f), mask_dtype),
        ),
        grid=(cores, tpc),
        in_specs=[
            pl.BlockSpec((tb, D_f), lambda c, i: (c * tpc + i, 0)),
            pl.BlockSpec((tb, D_f), lambda c, i: (c * tpc + i, 0)),
        ],
        out_specs=(
            pl.BlockSpec((acc_rows, D_f), lambda c, i: (c, 0)),   # per-core acc
            pl.BlockSpec((acc_rows, D_f), lambda c, i: (c, 0)),   # per-core acc
            pl.BlockSpec((tb, D_f), lambda c, i: (c * tpc + i, 0)),
        ),
        compiler_params=pltpu.CompilerParams(
            dimension_semantics=("parallel", "arbitrary"),
            vmem_limit_bytes=28 * 1024 * 1024,
        ),
        cost_estimate=cost,
    )(pred_f, true_f)

    # ---- tiny O(D) epilogue: fold core/sublane partials + r columns ----
    sums = sums_o.sum(axis=0)          # (D_f,)
    cnts = cnts_o.sum(axis=0)          # (D_f,) int32
    if r > 1:
        sums = sums.reshape(r, D).sum(axis=0)
        cnts = cnts.reshape(r, D).sum(axis=0)
    dim_means = sums / jnp.maximum(cnts, 1).astype(jnp.float32)

    mask = mask_o.reshape(B_pad, D)
    if pad:
        mask = mask[:B]
    if mask.dtype != jnp.bool_:
        mask = mask.astype(jnp.bool_)   # only on the int8 fallback path

    # TODO(synk): if y_pred may contain NaN/Inf at positions where y_true is
    # NaN, the PyTorch multiply-by-mask trick propagates NaN while this kernel
    # returns 0 for that element (documented divergence; y_pred assumed finite).
    return dim_means, mask


def _reference(y_pred, y_true):
    """Pure-JAX reference mirroring the PyTorch module."""
    mask = ~jnp.isnan(y_true)
    n_valid = jnp.maximum(jnp.sum(mask, axis=0), 1)
    y_pred_m = y_pred * mask.astype(y_pred.dtype)
    y_true_m = jnp.where(mask, y_true, jnp.zeros_like(y_true))
    abs_err = jnp.abs(y_pred_m - y_true_m)
    dim_losses = jnp.sum(abs_err, axis=0)
    return dim_losses / n_valid.astype(jnp.float32), mask


if __name__ == "__main__":
    key = jax.random.PRNGKey(0)
    k1, k2, k3 = jax.random.split(key, 3)

    batch_size, num_dims = 64, 16  # small shapes consistent with [batch, dims]
    y_pred = jax.random.normal(k1, (batch_size, num_dims), dtype=jnp.float32)
    y_true = jax.random.normal(k2, (batch_size, num_dims), dtype=jnp.float32)
    nan_mask = jax.random.bernoulli(k3, 0.3, (batch_size, num_dims))
    y_true = jnp.where(nan_mask, jnp.nan, y_true)

    dim_means, mask = multi_dim_nan_tolerant_l1_loss(y_pred, y_true)
    jax.block_until_ready((dim_means, mask))

    ref_means, ref_mask = _reference(y_pred, y_true)
    assert dim_means.shape == (num_dims,)
    assert mask.shape == (batch_size, num_dims)
    assert mask.dtype == jnp.bool_
    assert jnp.allclose(dim_means, ref_means, atol=1e-5, rtol=1e-5)
    assert jnp.array_equal(mask, ref_mask)

    # Second small case: exercises the NaN-row pad path (B not divisible by r).
    b2, d2 = 50, 16
    kk1, kk2, kk3 = jax.random.split(jax.random.PRNGKey(0), 3)
    p2 = jax.random.normal(kk1, (b2, d2), dtype=jnp.float32)
    t2 = jax.random.normal(kk2, (b2, d2), dtype=jnp.float32)
    t2 = jnp.where(jax.random.bernoulli(kk3, 0.3, (b2, d2)), jnp.nan, t2)
    m2, msk2 = multi_dim_nan_tolerant_l1_loss(p2, t2)
    jax.block_until_ready((m2, msk2))
    r2, rmask2 = _reference(p2, t2)
    assert m2.shape == (d2,) and msk2.shape == (b2, d2) and msk2.dtype == jnp.bool_
    assert jnp.allclose(m2, r2, atol=1e-5, rtol=1e-5)
    assert jnp.array_equal(msk2, rmask2)

    print("KERNEL_OK")
</pallas_src>

<mosaic_0001>
module attributes {stable_mosaic.version = 11 : i64} {
  func.func @probe(%arg0: memref<8x128xf32, #tpu.memory_space<vmem>>, %arg1: memref<8x128xi32, #tpu.memory_space<vmem>>) attributes {dimension_semantics = [], scalar_prefetch = 0 : i64, scratch_operands = 0 : i64, tpu.core_type = #tpu.core_type<tc>} {
    %c0 = arith.constant 0 : index
    %c0_0 = arith.constant 0 : index
    %0 = vector.load %arg0[%c0, %c0_0] : memref<8x128xf32, #tpu.memory_space<vmem>>, vector<8x128xf32>
    %cst = arith.constant 0.000000e+00 : f32
    %1 = vector.broadcast %cst : f32 to vector<8x128xf32>
    %2 = arith.cmpf ogt, %0, %1 : vector<8x128xf32>
    %c0_1 = arith.constant 0 : index
    %c0_2 = arith.constant 0 : index
    %3 = vector.load %arg1[%c0_1, %c0_2] : memref<8x128xi32, #tpu.memory_space<vmem>>, vector<8x128xi32>
    %4 = arith.extui %2 : vector<8x128xi1> to vector<8x128xi32>
    %cst_3 = arith.constant dense<0> : vector<8x128xi32>
    %5 = arith.cmpi ne, %3, %cst_3 : vector<8x128xi32>
    tpu.vector_store %arg1[%c0_1, %c0_2], %4 {strides = array<i32>} : memref<8x128xi32, #tpu.memory_space<vmem>>, vector<8x128xi32>,
    return
  }
}

module attributes {stable_mosaic.version = 11 : i64} {
  func.func @kernel(%arg0: i32, %arg1: i32, %arg2: memref<8x128xf32, #tpu.memory_space<vmem>>, %arg3: memref<8x128xf32, #tpu.memory_space<vmem>>, %arg4: memref<8x128xf32, #tpu.memory_space<vmem>>, %arg5: memref<8x128xi32, #tpu.memory_space<vmem>>, %arg6: memref<8x128xi8, #tpu.memory_space<vmem>>) attributes {dimension_semantics = [#tpu.dimension_semantics<parallel>, #tpu.dimension_semantics<arbitrary>], iteration_bounds = array<i64: 1, 1>, scalar_prefetch = 0 : i64, scratch_operands = 0 : i64, tpu.core_type = #tpu.core_type<tc>, window_params = [{transform_indices = @transform_0, window_bounds = array<i64: 8, 128>}, {transform_indices = @transform_1, window_bounds = array<i64: 8, 128>}, {transform_indices = @transform_2, window_bounds = array<i64: 8, 128>}, {transform_indices = @transform_3, window_bounds = array<i64: 8, 128>}, {transform_indices = @transform_4, window_bounds = array<i64: 8, 128>}]} {
    %c0_i32 = arith.constant 0 : i32
    %0 = arith.cmpi eq, %arg1, %c0_i32 : i32
    %1 = arith.extui %0 : i1 to i32
    %c0_i32_0 = arith.constant 0 : i32
    %2 = arith.cmpi ne, %1, %c0_i32_0 : i32
    scf.if %2 {
      %cst_17 = arith.constant 0.000000e+00 : f32
      %24 = vector.broadcast %cst_17 : f32 to vector<8x128xf32>
      %c0_18 = arith.constant 0 : index
      %c0_19 = arith.constant 0 : index
      %25 = vector.load %arg4[%c0_18, %c0_19] : memref<8x128xf32, #tpu.memory_space<vmem>>, vector<8x128xf32>
      tpu.vector_store %arg4[%c0_18, %c0_19], %24 {strides = array<i32>} : memref<8x128xf32, #tpu.memory_space<vmem>>, vector<8x128xf32>,
      %c0_i32_20 = arith.constant 0 : i32
      %26 = vector.broadcast %c0_i32_20 : i32 to vector<8x128xi32>
      %c0_21 = arith.constant 0 : index
      %c0_22 = arith.constant 0 : index
      %27 = vector.load %arg5[%c0_21, %c0_22] : memref<8x128xi32, #tpu.memory_space<vmem>>, vector<8x128xi32>
      tpu.vector_store %arg5[%c0_21, %c0_22], %26 {strides = array<i32>} : memref<8x128xi32, #tpu.memory_space<vmem>>, vector<8x128xi32>,
    } else {
    }
    %c0 = arith.constant 0 : index
    %c0_1 = arith.constant 0 : index
    %3 = vector.load %arg3[%c0, %c0_1] : memref<8x128xf32, #tpu.memory_space<vmem>>, vector<8x128xf32>
    %4 = arith.cmpf one, %3, %3 : vector<8x128xf32>
    %cst = arith.constant dense<true> : vector<8x128xi1>
    %5 = arith.xori %4, %cst : vector<8x128xi1>
    %c0_2 = arith.constant 0 : index
    %c0_3 = arith.constant 0 : index
    %6 = vector.load %arg2[%c0_2, %c0_3] : memref<8x128xf32, #tpu.memory_space<vmem>>, vector<8x128xf32>
    %7 = arith.subf %6, %3 : vector<8x128xf32>
    %8 = math.absf %7 : vector<8x128xf32>
    %cst_4 = arith.constant 0.000000e+00 : f32
    %9 = vector.broadcast %cst_4 : f32 to vector<8x128xf32>
    %10 = arith.select %5, %8, %9 : vector<8x128xi1>, vector<8x128xf32>
    %c0_5 = arith.constant 0 : index
    %c0_6 = arith.constant 0 : index
    %11 = vector.load %arg4[%c0_5, %c0_6] : memref<8x128xf32, #tpu.memory_space<vmem>>, vector<8x128xf32>
    %12 = vector.shape_cast %10 : vector<8x128xf32> to vector<1x8x128xf32>
    %cst_7 = arith.constant dense<0.000000e+00> : vector<8x128xf32>
    %13 = vector.multi_reduction <add>, %12, %cst_7 [0] : vector<1x8x128xf32> to vector<8x128xf32>
    %14 = arith.addf %11, %13 : vector<8x128xf32>
    %c0_8 = arith.constant 0 : index
    %c0_9 = arith.constant 0 : index
    %15 = vector.load %arg4[%c0_8, %c0_9] : memref<8x128xf32, #tpu.memory_space<vmem>>, vector<8x128xf32>
    tpu.vector_store %arg4[%c0_8, %c0_9], %14 {strides = array<i32>} : memref<8x128xf32, #tpu.memory_space<vmem>>, vector<8x128xf32>,
    %c0_10 = arith.constant 0 : index
    %c0_11 = arith.constant 0 : index
    %16 = vector.load %arg5[%c0_10, %c0_11] : memref<8x128xi32, #tpu.memory_space<vmem>>, vector<8x128xi32>
    %17 = arith.extui %5 : vector<8x128xi1> to vector<8x128xi32>
    %18 = vector.shape_cast %17 : vector<8x128xi32> to vector<1x8x128xi32>
    %cst_12 = arith.constant dense<0> : vector<8x128xi32>
    %19 = vector.multi_reduction <add>, %18, %cst_12 [0] : vector<1x8x128xi32> to vector<8x128xi32>
    %20 = arith.addi %16, %19 : vector<8x128xi32>
    %c0_13 = arith.constant 0 : index
    %c0_14 = arith.constant 0 : index
    %21 = vector.load %arg5[%c0_13, %c0_14] : memref<8x128xi32, #tpu.memory_space<vmem>>, vector<8x128xi32>
    tpu.vector_store %arg5[%c0_13, %c0_14], %20 {strides = array<i32>} : memref<8x128xi32, #tpu.memory_space<vmem>>, vector<8x128xi32>,
    %22 = arith.extui %5 : vector<8x128xi1> to vector<8x128xi8>
    %c0_15 = arith.constant 0 : index
    %c0_16 = arith.constant 0 : index
    %23 = vector.load %arg6[%c0_15, %c0_16] : memref<8x128xi8, #tpu.memory_space<vmem>>, vector<8x128xi8>
    tpu.vector_store %arg6[%c0_15, %c0_16], %22 {strides = array<i32>} : memref<8x128xi8, #tpu.memory_space<vmem>>, vector<8x128xi8>,
    return
  }
  func.func @transform_0(%arg0: i32, %arg1: i32) -> (i32, i32) {
    %c1_i32 = arith.constant 1 : i32
    %0 = arith.muli %arg0, %c1_i32 : i32
    %1 = arith.addi %0, %arg1 : i32
    %c0_i32 = arith.constant 0 : i32
    %c0_i32_0 = arith.constant 0 : i32
    return %1, %c0_i32 : i32, i32
  }
  func.func @transform_1(%arg0: i32, %arg1: i32) -> (i32, i32) {
    %c1_i32 = arith.constant 1 : i32
    %0 = arith.muli %arg0, %c1_i32 : i32
    %1 = arith.addi %0, %arg1 : i32
    %c0_i32 = arith.constant 0 : i32
    %c0_i32_0 = arith.constant 0 : i32
    return %1, %c0_i32 : i32, i32
  }
  func.func @transform_2(%arg0: i32, %arg1: i32) -> (i32, i32) {
    %c0_i32 = arith.constant 0 : i32
    %c0_i32_0 = arith.constant 0 : i32
    return %arg0, %c0_i32 : i32, i32
  }
  func.func @transform_3(%arg0: i32, %arg1: i32) -> (i32, i32) {
    %c0_i32 = arith.constant 0 : i32
    %c0_i32_0 = arith.constant 0 : i32
    return %arg0, %c0_i32 : i32, i32
  }
  func.func @transform_4(%arg0: i32, %arg1: i32) -> (i32, i32) {
    %c1_i32 = arith.constant 1 : i32
    %0 = arith.muli %arg0, %c1_i32 : i32
    %1 = arith.addi %0, %arg1 : i32
    %c0_i32 = arith.constant 0 : i32
    %c0_i32_0 = arith.constant 0 : i32
    return %1, %c0_i32 : i32, i32
  }
}

</mosaic_0001>

<llo_original>
// kernel: tpu_custom_call.1
$region0: #{tpu_custom_call.1}
  #allocation0 [shape = 'u32[]', space=smem, size = 0x4, offset = 0x4, fixed_abs, tag = 'smem constant byte address 0x4 - core index']
  #allocation1 [shape = 'u32[72,128]{1,0:T(1,128)}', space=vmem, size = 0x9000, scoped, tag = 'internal scratch']
  %s0 = inlined_call_operand.hbm [shape: f32[8,128], index: 0, kind: input, shape index: {}]
  %s1 = inlined_call_operand.vmem [shape: s32[8,128], index: 1, kind: output, shape index: {}]
  %s2 = sld [smem:[#allocation0]]
  $region18: #{tpu_custom_call.1} parent=0
    _
  %s4 = ssub.s32 1, %s2
  %s5 = scalar_select 0, %s4, %s2
  $region1: #{tpu_custom_call.1} parent=0
    #allocation2 [shape = 'u8[4096]{0}', space=vmem, size = 0x1000, scoped, tag = 'input window, operand 0, single buffered']
    #allocation3 [shape = 's32[1]{0}', space=sflag, size = 0x4, scoped, tag = 'scoped memory for tpu_custom_call.1']
    %6 = vsyncpa [#allocation3], 0
    // Predicated region
    $region2: #{tpu_custom_call.1} parent=1 // pred_check
      _
    $region3: #{tpu_custom_call.1} parent=1 // pred_check_branch
      %8 = sbr.rel (0) target = $region5
    $region4: #{tpu_custom_call.1} parent=1 // pred_region
      %10 = vsyncadd [#allocation3], 0
      %s12 = sshll.u32 %s0, 4
      %s13 = int_to_ptr.hbm [resolvable:$true] %s12
      %s14 = sshll.u32 [#allocation2], 4
      %s15 = int_to_ptr.vmem [resolvable:$true] %s14
      %17 = dma.hbm_to_vmem [thread:$0]  %s13, 128, %s15, [#allocation3]
    $region5: #{tpu_custom_call.1} parent=1 // pred_fallthru
      _
    // Predicated region
    $region6: #{tpu_custom_call.1} parent=1 // pred_check
      _
    $region7: #{tpu_custom_call.1} parent=1 // pred_check_branch
      %19 = sbr.rel (0) target = $region9
    $region8: #{tpu_custom_call.1} parent=1 // pred_region
      %21 = dma.done [#allocation3], 128
    $region9: #{tpu_custom_call.1} parent=1 // pred_fallthru
      _
    %v22 = vld [vmem:[#allocation2] sm:$0xff]
    %vm23 = vcmp.gt.f32.partialorder %v22, 0.0
    %v24 = vsel %vm23, 1, 0
    %25 = vst [vmem:[%s1] sm:$0xff] %v24
    // Predicated region
    $region10: #{tpu_custom_call.1} parent=1 // pred_check
      _
    $region11: #{tpu_custom_call.1} parent=1 // pred_check_branch
      %27 = sbr.rel (0) target = $region13
    $region12: #{tpu_custom_call.1} parent=1 // pred_region
      _
    $region13: #{tpu_custom_call.1} parent=1 // pred_fallthru
      _
    // Predicated region
    $region14: #{tpu_custom_call.1} parent=1 // pred_check
      _
    $region15: #{tpu_custom_call.1} parent=1 // pred_check_branch
      %29 = sbr.rel (0) target = $region17
    $region16: #{tpu_custom_call.1} parent=1 // pred_region
      _
    $region17: #{tpu_custom_call.1} parent=1 // pred_fallthru
      _
    %30 = vsyncpa [#allocation3], 1

// kernel: tpu_custom_call.1
$region0: #{tpu_custom_call.1}
  #allocation0 [shape = 'u32[]', space=smem, size = 0x4, offset = 0x4, fixed_abs, tag = 'smem constant byte address 0x4 - core index']
  #allocation1 [shape = 'u32[72,128]{1,0:T(1,128)}', space=vmem, size = 0x9000, scoped, tag = 'internal scratch']
  %s0 = inlined_call_operand.hbm [shape: f32[8,128], index: 0, kind: input, shape index: {}]
  %s1 = inlined_call_operand.hbm [shape: f32[8,128], index: 1, kind: input, shape index: {}]
  %s2 = inlined_call_operand.hbm [shape: f32[8,128], index: 2, kind: output, shape index: {0}]
  %s3 = inlined_call_operand.hbm [shape: s32[8,128], index: 3, kind: output, shape index: {1}]
  %s4 = inlined_call_operand.hbm [shape: s8[8,128], index: 4, kind: output, shape index: {2}]
  %5 = xla_tuple %s2, %s3, %s4
  %s6 = sld [smem:[#allocation0]]
  $region46: #{tpu_custom_call.1} parent=0
    _
  %s8 = ssub.s32 1, %s6
  %s9 = scalar_select 0, %s8, %s6
  $region1: #{tpu_custom_call.1} parent=0
    #allocation2 [shape = 'u8[4096]{0}', space=vmem, size = 0x1000, scoped, tag = 'input window, operand 0, single buffered']
    #allocation3 [shape = 's32[1]{0}', space=sflag, size = 0x4, scoped, tag = 'scoped memory for tpu_custom_call.1']
    #allocation4 [shape = 's32[1]{0}', space=sflag, size = 0x4, scoped, tag = 'scoped memory for tpu_custom_call.1']
    #allocation5 [shape = 'u8[4096]{0}', space=vmem, size = 0x1000, scoped, tag = 'input window, operand 1, single buffered']
    #allocation6 [shape = 's32[1]{0}', space=sflag, size = 0x4, scoped, tag = 'scoped memory for tpu_custom_call.1']
    #allocation7 [shape = 'u8[4096]{0}', space=vmem, size = 0x1000, scoped, tag = 'output window, operand 0, single buffered']
    #allocation8 [shape = 'u8[4096]{0}', space=vmem, size = 0x1000, scoped, tag = 'output window, operand 1, single buffered']
    #allocation9 [shape = 's32[1]{0}', space=sflag, size = 0x4, scoped, tag = 'scoped memory for tpu_custom_call.1']
    #allocation10 [shape = 'u8[1024]{0}', space=vmem, size = 0x400, scoped, tag = 'output window, operand 2, single buffered']
    %10 = vsyncpa [#allocation3], 0
    %11 = vsyncpa [#allocation6], 0
    %12 = vsyncpa [#allocation4], 0
    %13 = vsyncpa [#allocation9], 0
    // Predicated region
    $region2: #{tpu_custom_call.1} parent=1 // pred_check
      _
    $region3: #{tpu_custom_call.1} parent=1 // pred_check_branch
      %15 = sbr.rel (0) target = $region5
    $region4: #{tpu_custom_call.1} parent=1 // pred_region
      %s16 = sadd.s32 0, 0
      %18 = vsyncadd [#allocation3], 0
      %s19 = smul.addr %s16, 8
      %s20 = scalar_lea.hbm %s0, %s19
      %s22 = sshll.u32 %s20, 4
      %s23 = int_to_ptr.hbm [resolvable:$true] %s22
      %s24 = sshll.u32 [#allocation2], 4
      %s25 = int_to_ptr.vmem [resolvable:$true] %s24
      %27 = dma.hbm_to_vmem [thread:$0]  %s23, 128, %s25, [#allocation3]
    $region5: #{tpu_custom_call.1} parent=1 // pred_fallthru
      _
    // Predicated region
    $region6: #{tpu_custom_call.1} parent=1 // pred_check
      _
    $region7: #{tpu_custom_call.1} parent=1 // pred_check_branch
      %29 = sbr.rel (0) target = $region9
    $region8: #{tpu_custom_call.1} parent=1 // pred_region
      %s30 = sadd.s32 0, 0
      %32 = vsyncadd [#allocation6], 0
      %s33 = smul.addr %s30, 8
      %s34 = scalar_lea.hbm %s1, %s33
      %s36 = sshll.u32 %s34, 4
      %s37 = int_to_ptr.hbm [resolvable:$true] %s36
      %s38 = sshll.u32 [#allocation5], 4
      %s39 = int_to_ptr.vmem [resolvable:$true] %s38
      %41 = dma.hbm_to_vmem [thread:$0]  %s37, 128, %s39, [#allocation6]
    $region9: #{tpu_custom_call.1} parent=1 // pred_fallthru
      _
    // Predicated region
    $region10: #{tpu_custom_call.1} parent=1 // pred_check
      _
    $region11: #{tpu_custom_call.1} parent=1 // pred_check_branch
      %43 = sbr.rel (0) target = $region13
    $region12: #{tpu_custom_call.1} parent=1 // pred_region
      %45 = dma.done [#allocation3], 128
    $region13: #{tpu_custom_call.1} parent=1 // pred_fallthru
      _
    // Predicated region
    $region14: #{tpu_custom_call.1} parent=1 // pred_check
      _
    $region15: #{tpu_custom_call.1} parent=1 // pred_check_branch
      %47 = sbr.rel (0) target = $region17
    $region16: #{tpu_custom_call.1} parent=1 // pred_region
      %49 = dma.done [#allocation6], 128
    $region17: #{tpu_custom_call.1} parent=1 // pred_fallthru
      _
    %s50 = sadd.s32 0, 0
    %s51 = sadd.s32 0, 0
    %s52 = sadd.s32 0, 0
    %p55 = scmp.eq.s32.totalorder 0, 0
    // Predicated region
    $region18: #{tpu_custom_call.1} parent=1 // pred_check
      %p56 = pneg %p55
    $region19: #{tpu_custom_call.1} parent=1 // pred_check_branch
      %58 = sbr.rel (%p56) target = $region21
    $region20: #{tpu_custom_call.1} parent=1 // pred_region
      %59 = vst [vmem:[#allocation7] sm:$0xff] 0.0
      %60 = vst [vmem:[#allocation8] sm:$0xff] 0
    $region21: #{tpu_custom_call.1} parent=1 // pred_fallthru
      _
    %v61 = vld [vmem:[#allocation5] sm:$0xff]
    %vm62 = vcmp.ne.f32.partialorder %v61, %v61
    %vm63 = vmxor %vm62, 1
    %v64 = vld [vmem:[#allocation2] sm:$0xff]
    %v65 = vsub.f32 %v64, %v61
    %v66 = vand.u32 2147483647, %v65
    %v67 = vsel %vm63, %v66, 0.0
    %v68 = vld [vmem:[#allocation7] sm:$0xff]
    %v69 = vadd.f32 %v67, 0.0
    %v70 = vadd.f32 %v68, %v69
    %71 = vst [vmem:[#allocation7] sm:$0xff] %v70
    %v72 = vld [vmem:[#allocation8] sm:$0xff]
    %v73 = vsel %vm63, 1, 0
    %v74 = vadd.s32 %v72, %v73
    %75 = vst [vmem:[#allocation8] sm:$0xff] %v74
    %vm76 = vmpackc.low %vm63, %vm63
    %v77 = vsel %vm76, 16711935, 0
    %v78 = vsel %vm76, 16711935, 0
    %v79 = vpack.c.b8 %v78, %v77
    %vm80 = vnez %v79
    %v81 = vsel %vm80, 16843009, 0
    %82 = vst [vmem:[#allocation10] sm:$0x3] %v81
    // Predicated region
    $region22: #{tpu_custom_call.1} parent=1 // pred_check
      _
    $region23: #{tpu_custom_call.1} parent=1 // pred_check_branch
      %84 = sbr.rel (0) target = $region25
    $region24: #{tpu_custom_call.1} parent=1 // pred_region
      %86 = vsyncadd [#allocation4], 0
      %s88 = sshll.u32 [#allocation7], 4
      %s89 = int_to_ptr.vmem [resolvable:$true] %s88
      %s90 = sshll.u32 %s2, 4
      %s91 = int_to_ptr.hbm [resolvable:$true] %s90
      %93 = dma.vmem_to_hbm [thread:$0]  %s89, 128, %s91, [#allocation4]
    $region25: #{tpu_custom_call.1} parent=1 // pred_fallthru
      _
    // Predicated region
    $region26: #{tpu_custom_call.1} parent=1 // pred_check
      _
    $region27: #{tpu_custom_call.1} parent=1 // pred_check_branch
      %95 = sbr.rel (0) target = $region29
    $region28: #{tpu_custom_call.1} parent=1 // pred_region
      %97 = vsyncadd [#allocation9], 0
      %s99 = sshll.u32 [#allocation8], 4
      %s100 = int_to_ptr.vmem [resolvable:$true] %s99
      %s101 = sshll.u32 %s3, 4
      %s102 = int_to_ptr.hbm [resolvable:$true] %s101
      %104 = dma.vmem_to_hbm [thread:$0]  %s100, 128, %s102, [#allocation9]
    $region29: #{tpu_custom_call.1} parent=1 // pred_fallthru
      _
    // Predicated region
    $region30: #{tpu_custom_call.1} parent=1 // pred_check
      _
    $region31: #{tpu_custom_call.1} parent=1 // pred_check_branch
      %106 = sbr.rel (0) target = $region33
    $region32: #{tpu_custom_call.1} parent=1 // pred_region
      %s107 = sadd.s32 0, 0
      %109 = vsyncadd [#allocation9], 0
      %s110 = smul.addr %s107, 2
      %s111 = scalar_lea.hbm %s4, %s110
      %s113 = sshll.u32 [#allocation10], 4
      %s114 = int_to_ptr.vmem [resolvable:$true] %s113
      %s115 = sshll.u32 %s111, 4
      %s116 = int_to_ptr.hbm [resolvable:$true] %s115
      %118 = dma.vmem_to_hbm [thread:$0]  %s114, 32, %s116, [#allocation9]
    $region33: #{tpu_custom_call.1} parent=1 // pred_fallthru
      _
    // Predicated region
    $region34: #{tpu_custom_call.1} parent=1 // pred_check
      _
    $region35: #{tpu_custom_call.1} parent=1 // pred_check_branch
      %120 = sbr.rel (0) target = $region37
    $region36: #{tpu_custom_call.1} parent=1 // pred_region
      %122 = dma.done [#allocation4], 128
    $region37: #{tpu_custom_call.1} parent=1 // pred_fallthru
      _
    // Predicated region
    $region38: #{tpu_custom_call.1} parent=1 // pred_check
      _
    $region39: #{tpu_custom_call.1} parent=1 // pred_check_branch
      %124 = sbr.rel (0) target = $region41
    $region40: #{tpu_custom_call.1} parent=1 // pred_region
      %126 = dma.done [#allocation9], 128
    $region41: #{tpu_custom_call.1} parent=1 // pred_fallthru
      _
    // Predicated region
    $region42: #{tpu_custom_call.1} parent=1 // pred_check
      _
    $region43: #{tpu_custom_call.1} parent=1 // pred_check_branch
      %128 = sbr.rel (0) target = $region45
    $region44: #{tpu_custom_call.1} parent=1 // pred_region
      %130 = dma.done [#allocation9], 32
    $region45: #{tpu_custom_call.1} parent=1 // pred_fallthru
      _
    %131 = vsyncpa [#allocation3], 1
    %132 = vsyncpa [#allocation6], 1
    %133 = vsyncpa [#allocation4], 1
    %134 = vsyncpa [#allocation9], 1

</llo_original>
